<compile_context>
chip_gen: v7x
topology: tpu7x:2x2x1
jax: 0.10.0
libtpu: 0.0.40
codegen_flags: <defaults>
</compile_context>

<pallas_src>
import jax
import jax.numpy as jnp
from jax.experimental import pallas as pl
from jax.experimental.pallas import tpu as pltpu

LEAKY_SLOPE = 0.01   # nn.LeakyReLU default negative_slope
BN_EPS = 1e-5        # nn.BatchNorm1d default eps


def block_kernel(x_ref, wt_ref, p_ref, o_ref):
    x = x_ref[...]           # (N, D_in)        float32
    wt = wt_ref[...]         # (D_in, D_out)    pre-transposed weight
    p = p_ref[...]           # (3, D_out):      [bias; gamma; beta]
    bias = p[0:1, :]
    gamma = p[1:2, :]
    beta = p[2:3, :]

    # Linear: x @ W^T (+ bias). Weight already transposed at init -> straight MXU push.
    y = jnp.dot(x, wt, preferred_element_type=jnp.float32) + bias

    # LeakyReLU(0.01): one VPU max (no compare mask / select).
    y = jnp.maximum(y, LEAKY_SLOPE * y)

    # BatchNorm1d, training mode: biased batch statistics over the batch axis.
    # Single-pass fused stats: mean = E[y], var = E[y^2] - mean^2 (clamped at 0).
    inv_n = 1.0 / y.shape[0]
    s = jnp.sum(y, axis=0, keepdims=True)          # (1, D_out)
    ss = jnp.sum(y * y, axis=0, keepdims=True)     # (1, D_out)
    mean = s * inv_n
    var = jnp.maximum(ss * inv_n - mean * mean, 0.0)

    # Scale/shift epilogue: only 2 full-(N,D)-tile VPU ops (mul + add).
    scale = gamma * jax.lax.rsqrt(var + BN_EPS)    # (1, D_out), rsqrt on EUP
    shift = beta - mean * scale                    # (1, D_out)
    o_ref[...] = y * scale + shift


def prepare_block_params(w, b, gamma, beta):
    """One-time parameter prep (hoisted out of the per-call path).
    w: (D_out, D_in) PyTorch Linear.weight layout; b/gamma/beta: (D_out,) or (1, D_out).
    Returns (wt, params) with wt: (D_in, D_out), params: (3, D_out) = [bias; gamma; beta]."""
    d_out = w.shape[0]
    wt = jnp.asarray(w, jnp.float32).T
    params = jnp.stack(
        [jnp.reshape(jnp.asarray(b, jnp.float32), (d_out,)),
         jnp.reshape(jnp.asarray(gamma, jnp.float32), (d_out,)),
         jnp.reshape(jnp.asarray(beta, jnp.float32), (d_out,))],
        axis=0,
    )
    return wt, params


@jax.jit
def block_forward(x, wt, params):
    """x: (N, D_in) f32; wt: (D_in, D_out); params: (3, D_out).
    Returns squeeze(BatchNorm(LeakyReLU(x @ W^T + b)))."""
    n, d_in = x.shape
    d_out = wt.shape[1]

    flops = 2 * n * d_in * d_out + 8 * n * d_out
    bytes_accessed = 4 * (n * d_in + d_in * d_out + 3 * d_out + n * d_out)

    out = pl.pallas_call(
        block_kernel,
        out_shape=jax.ShapeDtypeStruct((n, d_out), jnp.float32),
        in_specs=[
            pl.BlockSpec(memory_space=pltpu.MemorySpace.VMEM),  # x
            pl.BlockSpec(memory_space=pltpu.MemorySpace.VMEM),  # W^T
            pl.BlockSpec(memory_space=pltpu.MemorySpace.VMEM),  # [bias; gamma; beta]
        ],
        out_specs=pl.BlockSpec(memory_space=pltpu.MemorySpace.VMEM),
        cost_estimate=pl.CostEstimate(
            flops=flops, transcendentals=d_out, bytes_accessed=bytes_accessed),
    )(x, wt, params)

    # Mimic PyTorch's trailing .squeeze() (no-op for (8,16), drops size-1 dims otherwise).
    return jnp.squeeze(out)


if __name__ == "__main__":
    # Small shapes consistent with the module: batch=8, input_size=32, output_size=16.
    N, D_IN, D_OUT = 8, 32, 16

    key = jax.random.PRNGKey(0)
    kx, kw, kb, kg, kbt = jax.random.split(key, 5)

    x = jax.random.normal(kx, (N, D_IN), dtype=jnp.float32)

    # Deterministic synthetic parameters (same layouts as nn.Linear / nn.BatchNorm1d).
    bound = 1.0 / jnp.sqrt(D_IN)
    w = jax.random.uniform(kw, (D_OUT, D_IN), minval=-bound, maxval=bound,
                           dtype=jnp.float32)                                  # Linear.weight
    b = jax.random.uniform(kb, (1, D_OUT), minval=-bound, maxval=bound,
                           dtype=jnp.float32)                                  # Linear.bias
    gamma = 1.0 + 0.1 * jax.random.normal(kg, (1, D_OUT), dtype=jnp.float32)   # BN.weight
    beta = 0.1 * jax.random.normal(kbt, (1, D_OUT), dtype=jnp.float32)         # BN.bias

    # One-time parameter prep (cached across calls).
    wt, params = prepare_block_params(w, b, gamma, beta)
    wt, params = jax.block_until_ready((wt, params))

    out = block_forward(x, wt, params)
    jax.block_until_ready(out)

    # Pure-JAX reference (two-pass BN stats, same training-mode semantics).
    y_ref = x @ w.T + b
    y_ref = jnp.where(y_ref >= 0, y_ref, LEAKY_SLOPE * y_ref)
    m = jnp.mean(y_ref, axis=0, keepdims=True)
    v = jnp.mean((y_ref - m) ** 2, axis=0, keepdims=True)
    y_ref = jnp.squeeze(gamma * (y_ref - m) * jax.lax.rsqrt(v + BN_EPS) + beta)

    assert out.shape == y_ref.shape
    assert jnp.max(jnp.abs(out - y_ref)) < 1e-4

    print("KERNEL_OK")
</pallas_src>

<mosaic_0001>
module attributes {stable_mosaic.version = 11 : i64} {
  func.func @block_kernel(%arg0: memref<8x32xf32, #tpu.memory_space<vmem>>, %arg1: memref<32x16xf32, #tpu.memory_space<vmem>>, %arg2: memref<3x16xf32, #tpu.memory_space<vmem>>, %arg3: memref<8x16xf32, #tpu.memory_space<vmem>>) attributes {dimension_semantics = [], scalar_prefetch = 0 : i64, scratch_operands = 0 : i64, tpu.core_type = #tpu.core_type<tc>} {
    %c0 = arith.constant 0 : index
    %c0_0 = arith.constant 0 : index
    %0 = vector.load %arg0[%c0, %c0_0] : memref<8x32xf32, #tpu.memory_space<vmem>>, vector<8x32xf32>
    %c0_1 = arith.constant 0 : index
    %c0_2 = arith.constant 0 : index
    %1 = vector.load %arg1[%c0_1, %c0_2] : memref<32x16xf32, #tpu.memory_space<vmem>>, vector<32x16xf32>
    %c0_3 = arith.constant 0 : index
    %c0_4 = arith.constant 0 : index
    %2 = vector.load %arg2[%c0_3, %c0_4] : memref<3x16xf32, #tpu.memory_space<vmem>>, vector<3x16xf32>
    %3 = vector.extract_strided_slice %2 {offsets = [0, 0], sizes = [1, 16], strides = [1, 1]} : vector<3x16xf32> to vector<1x16xf32>
    %4 = vector.extract_strided_slice %2 {offsets = [1, 0], sizes = [1, 16], strides = [1, 1]} : vector<3x16xf32> to vector<1x16xf32>
    %5 = vector.extract_strided_slice %2 {offsets = [2, 0], sizes = [1, 16], strides = [1, 1]} : vector<3x16xf32> to vector<1x16xf32>
    %cst = arith.constant dense<0.000000e+00> : vector<8x16xf32>
    %6 = tpu.matmul %0, %1, %cst {dimension_numbers = #tpu.dot_dimension_numbers<[1], [0], [0], [1], [0, 0, 1, 1], [], []>} : vector<8x32xf32>, vector<32x16xf32>, vector<8x16xf32> -> vector<8x16xf32>
    %7 = vector.broadcast %3 : vector<1x16xf32> to vector<8x16xf32>
    %8 = arith.addf %6, %7 : vector<8x16xf32>
    %cst_5 = arith.constant 0.00999999977 : f32
    %9 = vector.broadcast %cst_5 : f32 to vector<8x16xf32>
    %10 = arith.mulf %9, %8 : vector<8x16xf32>
    %11 = arith.maximumf %8, %10 : vector<8x16xf32>
    %cst_6 = arith.constant dense<0.000000e+00> : vector<16xf32>
    %12 = vector.multi_reduction <add>, %11, %cst_6 [0] : vector<8x16xf32> to vector<16xf32>
    %13 = vector.shape_cast %12 : vector<16xf32> to vector<1x16xf32>
    %14 = arith.mulf %11, %11 : vector<8x16xf32>
    %cst_7 = arith.constant dense<0.000000e+00> : vector<16xf32>
    %15 = vector.multi_reduction <add>, %14, %cst_7 [0] : vector<8x16xf32> to vector<16xf32>
    %16 = vector.shape_cast %15 : vector<16xf32> to vector<1x16xf32>
    %cst_8 = arith.constant 1.250000e-01 : f32
    %17 = vector.broadcast %cst_8 : f32 to vector<1x16xf32>
    %18 = arith.mulf %13, %17 : vector<1x16xf32>
    %cst_9 = arith.constant 1.250000e-01 : f32
    %19 = vector.broadcast %cst_9 : f32 to vector<1x16xf32>
    %20 = arith.mulf %16, %19 : vector<1x16xf32>
    %21 = arith.mulf %18, %18 : vector<1x16xf32>
    %22 = arith.subf %20, %21 : vector<1x16xf32>
    %cst_10 = arith.constant 0.000000e+00 : f32
    %23 = vector.broadcast %cst_10 : f32 to vector<1x16xf32>
    %24 = arith.maximumf %22, %23 : vector<1x16xf32>
    %cst_11 = arith.constant 9.99999974E-6 : f32
    %25 = vector.broadcast %cst_11 : f32 to vector<1x16xf32>
    %26 = arith.addf %24, %25 : vector<1x16xf32>
    %27 = math.rsqrt %26 : vector<1x16xf32>
    %28 = arith.mulf %4, %27 : vector<1x16xf32>
    %29 = arith.mulf %18, %28 : vector<1x16xf32>
    %30 = arith.subf %5, %29 : vector<1x16xf32>
    %31 = vector.broadcast %28 : vector<1x16xf32> to vector<8x16xf32>
    %32 = arith.mulf %11, %31 : vector<8x16xf32>
    %33 = vector.broadcast %30 : vector<1x16xf32> to vector<8x16xf32>
    %34 = arith.addf %32, %33 : vector<8x16xf32>
    %c0_12 = arith.constant 0 : index
    %c0_13 = arith.constant 0 : index
    %35 = vector.load %arg3[%c0_12, %c0_13] : memref<8x16xf32, #tpu.memory_space<vmem>>, vector<8x16xf32>
    tpu.vector_store %arg3[%c0_12, %c0_13], %34 {strides = array<i32>} : memref<8x16xf32, #tpu.memory_space<vmem>>, vector<8x16xf32>,
    return
  }
}

</mosaic_0001>

<llo_original>
// kernel: block_forward.1
$region0: #{block_forward.1}
  #allocation0 [shape = 'u32[]', space=smem, size = 0x4, offset = 0x4, fixed_abs, tag = 'smem constant byte address 0x4 - core index']
  #allocation1 [shape = 'u32[144,128]{1,0:T(1,128)}', space=vmem, size = 0x12000, scoped, tag = 'internal scratch']
  %s0 = inlined_call_operand.vmem [shape: f32[8,32], index: 0, kind: input, shape index: {}]
  %s1 = inlined_call_operand.vmem [shape: f32[32,16], index: 1, kind: input, shape index: {}]
  %s2 = inlined_call_operand.vmem [shape: f32[3,16], index: 2, kind: input, shape index: {}]
  %s3 = inlined_call_operand.hbm [shape: f32[8,16], index: 3, kind: output, shape index: {}]
  %s4 = sld [smem:[#allocation0]]
  $region22: #{block_forward.1} parent=0
    _
  %s6 = ssub.s32 1, %s4
  %s7 = scalar_select 0, %s6, %s4
  $region1: #{block_forward.1} parent=0
    #allocation2 [shape = 'u8[4096]{0}', space=vmem, size = 0x1000, scoped, tag = 'output window, operand 0, single buffered']
    #allocation3 [shape = 's32[1]{0}', space=sflag, size = 0x4, scoped, tag = 'scoped memory for block_forward.1']
    %8 = vsyncpa [#allocation3], 0
    // Predicated region
    $region2: #{block_forward.1} parent=1 // pred_check
      _
    $region3: #{block_forward.1} parent=1 // pred_check_branch
      %10 = sbr.rel (0) target = $region5
    $region4: #{block_forward.1} parent=1 // pred_region
      _
    $region5: #{block_forward.1} parent=1 // pred_fallthru
      _
    // Predicated region
    $region6: #{block_forward.1} parent=1 // pred_check
      _
    $region7: #{block_forward.1} parent=1 // pred_check_branch
      %12 = sbr.rel (0) target = $region9
    $region8: #{block_forward.1} parent=1 // pred_region
      _
    $region9: #{block_forward.1} parent=1 // pred_fallthru
      _
    // Predicated region
    $region10: #{block_forward.1} parent=1 // pred_check
      _
    $region11: #{block_forward.1} parent=1 // pred_check_branch
      %14 = sbr.rel (0) target = $region13
    $region12: #{block_forward.1} parent=1 // pred_region
      _
    $region13: #{block_forward.1} parent=1 // pred_fallthru
      _
    %v15 = vld [vmem:[%s0] sm:$0xff]
    %v16 = vld [vmem:[%s1] sm:$0xff]
    %v17 = vld [vmem:[%s1 + $0x8] sm:$0xff]
    %v18 = vld [vmem:[%s1 + $0x10] sm:$0xff]
    %v19 = vld [vmem:[%s1 + $0x18] sm:$0xff]
    %v20 = vld [vmem:[%s2] sm:$0x7]
    %v21 = vlaneseq
    %v22 = vshrl.u32 %v21, 7
    %v23 = vsub.s32 0, %v22
    %v24 = vrot.slane %v20, %v23
    %vm25 = vcmask 261120
    %v27 = vsel %vm25, %v15, 0
    %29 = vmatprep.subr.mxu0 0.0
    %30 = vmatpush1.msra.mxu0 %v16
    %31 = vmatprep.subr.mxu0 0.0
    %32 = vmatpush1.msra.mxu0 %v17
    %33 = vmatprep.subr.mxu0 0.0
    %34 = vmatpush1.msra.mxu0 %v18
    %35 = vmatprep.subr.mxu0 0.0
    %36 = vmatpush1.msra.mxu0 %v19
    %37 = vmatprep.subr.mxu0 0.0
    %38 = vmatpush1.msra.mxu0 0.0
    %39 = vmatprep.subr.mxu0 0.0
    %40 = vmatpush1.msra.mxu0 0.0
    %41 = vmatprep.subr.mxu0 0.0
    %42 = vmatpush1.msra.mxu0 0.0
    %43 = vmatprep.subr.mxu0 0.0
    %44 = vmatpush1.msra.mxu0 0.0
    %45 = vmatprep.subr.mxu0 0.0
    %46 = vmatpush1.msra.mxu0 0.0
    %47 = vmatprep.subr.mxu0 0.0
    %48 = vmatpush1.msra.mxu0 0.0
    %49 = vmatprep.subr.mxu0 0.0
    %50 = vmatpush1.msra.mxu0 0.0
    %51 = vmatprep.subr.mxu0 0.0
    %52 = vmatpush1.msra.mxu0 0.0
    %53 = vmatprep.subr.mxu0 0.0
    %54 = vmatpush1.msra.mxu0 0.0
    %55 = vmatprep.subr.mxu0 0.0
    %56 = vmatpush1.msra.mxu0 0.0
    %57 = vmatprep.subr.mxu0 0.0
    %58 = vmatpush1.msra.mxu0 0.0
    %59 = vmatprep.subr.mxu0 0.0
    %60 = vmatpush1.msra.mxu0 0.0
    %61 = vmatprep.subr.mxu0 0.0
    %62 = vmatpush1.msra.mxu0 0.0
    %63 = vmatprep.subr.mxu0 0.0
    %64 = vmatpush1.msra.mxu0 0.0
    %65 = vmatprep.subr.mxu0 0.0
    %66 = vmatpush1.msra.mxu0 0.0
    %67 = vmatprep.subr.mxu0 0.0
    %68 = vmatpush1.msra.mxu0 0.0
    %69 = vmatprep.subr.mxu0 0.0
    %70 = vmatpush1.msra.mxu0 0.0
    %71 = vmatprep.subr.mxu0 0.0
    %72 = vmatpush1.msra.mxu0 0.0
    %73 = vmatprep.subr.mxu0 0.0
    %74 = vmatpush1.msra.mxu0 0.0
    %75 = vmatprep.subr.mxu0 0.0
    %76 = vmatpush1.msra.mxu0 0.0
    %77 = vmatprep.subr.mxu0 0.0
    %78 = vmatpush1.msra.mxu0 0.0
    %79 = vmatprep.subr.mxu0 0.0
    %80 = vmatpush1.msra.mxu0 0.0
    %81 = vmatprep.subr.mxu0 0.0
    %82 = vmatpush1.msra.mxu0 0.0
    %83 = vmatprep.subr.mxu0 0.0
    %84 = vmatpush1.msra.mxu0 0.0
    %85 = vmatprep.subr.mxu0 0.0
    %86 = vmatpush1.msra.mxu0 0.0
    %87 = vmatprep.subr.mxu0 0.0
    %88 = vmatpush1.msra.mxu0 0.0
    %89 = vmatprep.subr.mxu0 0.0
    %90 = vmatpush1.msra.mxu0 0.0
    %91 = vmatprep.subr.mxu0 0.0
    %92 = vmatpush1.msra.mxu0 0.0
    %93 = vmatprep.mubr.f32.mxu0 0.0
    %94 = vmatmul.mubr.f32.gmra.mrb[0].mxu0 %v27
    %v95 = vpop.f32.mrb[0].mxu0
    %v96 = vadd.f32 %v24, %v95
    %v97 = vpop.f32.mrb[0].mxu0
    %98 = vdwg.mxu0
    %v99 = vmul.f32 %v96, 0.01
    %v100 = vmax.f32 %v96, %v99
    %vm101 = vcmask 130048
    %v102 = vsel %vm101, %v100, 0.0
    %v103 = vrot.slane %v102, 4
    %v104 = vadd.f32 %v102, %v103
    %v105 = vrot.slane %v104, 2
    %v106 = vadd.f32 %v104, %v105
    %v107 = vrot.slane %v106, 1
    %v108 = vadd.f32 %v106, %v107
    %v109 = vmul.f32 %v100, %v100
    %v110 = vsel %vm101, %v109, 0.0
    %v111 = vrot.slane %v110, 4
    %v112 = vadd.f32 %v110, %v111
    %v113 = vrot.slane %v112, 2
    %v114 = vadd.f32 %v112, %v113
    %v115 = vrot.slane %v114, 1
    %v116 = vadd.f32 %v114, %v115
    %v117 = vmul.f32 %v108, 0.125
    %v118 = vmul.f32 %v116, 0.125
    %v119 = vmul.f32 %v117, %v117
    %v120 = vsub.f32 %v118, %v119
    %v121 = vmax.f32 %v120, 0.0
    %v122 = vadd.f32 %v121, 1e-05
    %v123 = vrsqrt.pop %v122
    %v124 = vmul.f32 %v20, %v123
    %v125 = vmul.f32 %v117, %v124
    %v127 = vrot.slane %v125, 7
    %v129 = vsub.f32 %v20, %v127
    %v130 = vlaneseq
    %v131 = vshrl.u32 %v130, 7
    %v132 = vsub.s32 1, %v131
    %v133 = vrot.slane %v124, %v132
    %v134 = vmul.f32 %v100, %v133
    %v135 = vlaneseq
    %v136 = vshrl.u32 %v135, 7
    %v137 = vsub.s32 2, %v136
    %v138 = vrot.slane %v129, %v137
    %v139 = vadd.f32 %v134, %v138
    %140 = vst.msk [vmem:[#allocation2] sm:$0xff] %vm101, %v139
    // Predicated region
    $region14: #{block_forward.1} parent=1 // pred_check
      _
    $region15: #{block_forward.1} parent=1 // pred_check_branch
      %142 = sbr.rel (0) target = $region17
    $region16: #{block_forward.1} parent=1 // pred_region
      %s144 = ssub.s32 128, 128
      %145 = vsyncadd [#allocation3], %s144
      %s147 = sshll.u32 [#allocation2], 4
      %s148 = int_to_ptr.vmem [resolvable:$true] %s147
      %150 = dma.vmem_to_hbm [thread:$0]  %s148, 128, %s3, [#allocation3]
    $region17: #{block_forward.1} parent=1 // pred_fallthru
      _
    // Predicated region
    $region18: #{block_forward.1} parent=1 // pred_check
      _
    $region19: #{block_forward.1} parent=1 // pred_check_branch
      %152 = sbr.rel (0) target = $region21
    $region20: #{block_forward.1} parent=1 // pred_region
      %153 = dma.done [#allocation3], 128
    $region21: #{block_forward.1} parent=1 // pred_fallthru
      _
    %154 = vsyncpa [#allocation3], 1

</llo_original>
